<compile_context>
chip_gen: v6e
topology: v6e:2x2x1
jax: 0.10.0
libtpu: 0.0.40
codegen_flags: <defaults>
</compile_context>

<pallas_src>
import jax
import jax.numpy as jnp
from jax.experimental import pallas as pl
from jax.experimental.pallas import tpu as pltpu


def _round_up(n, m):
    return ((n + m - 1) // m) * m


def _sigmoid(x):
    # sigmoid(x) = 0.5 * (1 + tanh(x/2)); tanh lowers to the EUP slot and is stable.
    return 0.5 * jnp.tanh(0.5 * x) + 0.5


def discriminator_kernel(xt_ref, w1_ref, p_ref, o_ref):
    # xt_ref: (4, R, 128) f32 VMEM tile -- feature k -> dense (R, 128) batch slab.
    # w1_ref: (12,) f32 SMEM -- w1 (in=4, out=3) flattened row-major.
    # p_ref:  (7,)  f32 SMEM -- [b1(3), w2(3), b2(1)].
    # o_ref:  (R, 128) f32 VMEM tile (sublane- and lane-dense output).
    x0 = xt_ref[0]
    x1 = xt_ref[1]
    x2 = xt_ref[2]
    x3 = xt_ref[3]

    y = None
    for j in range(3):                                   # hidden unit j (unrolled)
        z = (x0 * w1_ref[0 * 3 + j]
             + x1 * w1_ref[1 * 3 + j]
             + x2 * w1_ref[2 * 3 + j]
             + x3 * w1_ref[3 * 3 + j]
             + p_ref[j])                                 # + b1[j]
        h_j = _sigmoid(z)                                # nn.Sigmoid()
        t = h_j * p_ref[3 + j]                           # * w2[j]
        y = t if y is None else y + t

    o_ref[...] = _sigmoid(y + p_ref[6]).astype(o_ref.dtype)   # + b2, nn.Sigmoid()


def _choose_tile(batch, block_b):
    """Batch-tile size (lanes) and padded batch. Tiles are 1024-lane multiples when
    the batch is big; capped at block_b (VMEM) and at half the batch (2 TCs on v7x)."""
    b128 = _round_up(max(batch, 1), 128)
    if b128 <= 1024:
        return b128, b128                       # single small tile
    half = _round_up((b128 + 1) // 2, 1024)
    tb = max(1024, min(block_b, half))
    return tb, _round_up(b128, tb)


def discriminator_forward_feature_major(xfm, w1, b1, w2, b2, *, block_b=262144):
    """xfm: (4, B) float32 feature-major input -> (B,) float32 output.

    This is the roofline path: no transpose, the (4, b_pad) -> (4, R, 128) reshape
    is contiguous (zero copy).  Weights stored (in, out): w1 (4,3), b1 (3,), w2 (3,),
    b2 (1,), i.e. x @ w1 semantics (transpose of torch's (out, in)).
    """
    F, B = xfm.shape
    assert F == 4
    if B == 0:
        return jnp.zeros((0,), jnp.float32)

    tb, b_pad = _choose_tile(B, block_b)
    xfm = xfm.astype(jnp.float32)
    if b_pad != B:
        xfm = jnp.pad(xfm, ((0, 0), (0, b_pad - B)))     # padded tail is sliced off
    r, rt = b_pad // 128, tb // 128
    xt = xfm.reshape(4, r, 128)                          # contiguous reshape

    w1_flat = w1.reshape(12).astype(jnp.float32)
    p = jnp.concatenate([b1.reshape(3), w2.reshape(3), b2.reshape(1)]).astype(jnp.float32)

    out = pl.pallas_call(
        discriminator_kernel,
        out_shape=jax.ShapeDtypeStruct((r, 128), jnp.float32),
        grid=(b_pad // tb,),
        in_specs=[
            pl.BlockSpec((4, rt, 128), lambda i: (0, i, 0)),            # batch tile
            pl.BlockSpec(memory_space=pltpu.MemorySpace.SMEM),          # w1 scalars
            pl.BlockSpec(memory_space=pltpu.MemorySpace.SMEM),          # b1/w2/b2
        ],
        out_specs=pl.BlockSpec((rt, 128), lambda i: (i, 0)),
        compiler_params=pltpu.CompilerParams(
            dimension_semantics=("parallel",),   # independent batch tiles (2 TCs on v7x)
        ),
        cost_estimate=pl.CostEstimate(
            flops=40 * b_pad, transcendentals=4 * b_pad, bytes_accessed=20 * b_pad),
    )(xt, w1_flat, p)

    return out.reshape(b_pad)[:B]


def discriminator_forward(x, w1, b1, w2, b2, *, block_b=262144):
    """PyTorch-contract forward: x (B, 4) float -> (B, 1) float32.

    NOTE: the tall-skinny (B,4)->(4,B) transpose below is a separate XLA op that
    reads+writes ~16 B/row on top of the kernel's ~20 B/row; once the kernel is at
    the HBM roofline this layout plumbing is the dominant end-to-end cost.  Prefer
    discriminator_forward_feature_major with a (4, B) producer layout.
    """
    B = x.shape[0]
    if B == 0:
        return jnp.zeros((0, 1), jnp.float32)
    xfm = x.astype(jnp.float32).T
    out = discriminator_forward_feature_major(xfm, w1, b1, w2, b2, block_b=block_b)
    return out.reshape(B, 1)


def init_params(key):
    """PyTorch nn.Linear default init (U[-1/sqrt(fan_in), +1/sqrt(fan_in)]),
    with weights stored as (in, out) = transpose of torch's (out, in)."""
    k1, k2, k3, k4 = jax.random.split(key, 4)
    bound1 = 1.0 / jnp.sqrt(4.0)
    bound2 = 1.0 / jnp.sqrt(3.0)
    w1 = jax.random.uniform(k1, (4, 3), jnp.float32, -bound1, bound1)
    b1 = jax.random.uniform(k2, (3,), jnp.float32, -bound1, bound1)
    w2 = jax.random.uniform(k3, (3,), jnp.float32, -bound2, bound2)
    b2 = jax.random.uniform(k4, (1,), jnp.float32, -bound2, bound2)
    return w1, b1, w2, b2


def _reference(x, w1, b1, w2, b2):
    h = jax.nn.sigmoid(x @ w1 + b1)
    return jax.nn.sigmoid(h @ w2.reshape(3, 1) + b2.reshape(1, 1))


if __name__ == "__main__":
    key = jax.random.PRNGKey(0)
    k_x, k_x2, k_p = jax.random.split(key, 3)
    w1, b1, w2, b2 = init_params(k_p)

    # Small batch (single 128-lane tile, padded tail).
    B = 8
    x = jax.random.normal(k_x, (B, 4), jnp.float32)
    out = jax.block_until_ready(discriminator_forward(x, w1, b1, w2, b2))
    ref = _reference(x, w1, b1, w2, b2)
    assert out.shape == (B, 1)
    assert jnp.allclose(out, ref, atol=1e-5), (out, ref)

    # Non-multiple-of-128 batch that exercises the multi-tile (2-tile) grid path.
    B2 = 1200
    x2 = jax.random.normal(k_x2, (B2, 4), jnp.float32)
    out2 = jax.block_until_ready(discriminator_forward(x2, w1, b1, w2, b2))
    ref2 = _reference(x2, w1, b1, w2, b2)
    assert out2.shape == (B2, 1)
    assert jnp.allclose(out2, ref2, atol=1e-5)

    print("KERNEL_OK")
</pallas_src>

<mosaic_0001>
module attributes {stable_mosaic.version = 11 : i64} {
  func.func @discriminator_kernel(%arg0: i32, %arg1: memref<4x1x128xf32, #tpu.memory_space<vmem>>, %arg2: memref<12xf32, #tpu.memory_space<smem>>, %arg3: memref<7xf32, #tpu.memory_space<smem>>, %arg4: memref<1x128xf32, #tpu.memory_space<vmem>>) attributes {dimension_semantics = [#tpu.dimension_semantics<parallel>], iteration_bounds = array<i64: 1>, scalar_prefetch = 0 : i64, scratch_operands = 0 : i64, tpu.core_type = #tpu.core_type<tc>, window_params = [{transform_indices = @transform_0, window_bounds = array<i64: 4, 1, 128>}, {transform_indices = @transform_1, window_bounds = array<i64: 12>}, {transform_indices = @transform_2, window_bounds = array<i64: 7>}, {transform_indices = @transform_3, window_bounds = array<i64: 1, 128>}]} {
    %c0 = arith.constant 0 : index
    %c0_0 = arith.constant 0 : index
    %c0_1 = arith.constant 0 : index
    %0 = vector.load %arg1[%c0, %c0_0, %c0_1] : memref<4x1x128xf32, #tpu.memory_space<vmem>>, vector<1x1x128xf32>
    %1 = vector.shape_cast %0 : vector<1x1x128xf32> to vector<1x128xf32>
    %c1 = arith.constant 1 : index
    %c0_2 = arith.constant 0 : index
    %c0_3 = arith.constant 0 : index
    %2 = vector.load %arg1[%c1, %c0_2, %c0_3] : memref<4x1x128xf32, #tpu.memory_space<vmem>>, vector<1x1x128xf32>
    %3 = vector.shape_cast %2 : vector<1x1x128xf32> to vector<1x128xf32>
    %c2 = arith.constant 2 : index
    %c0_4 = arith.constant 0 : index
    %c0_5 = arith.constant 0 : index
    %4 = vector.load %arg1[%c2, %c0_4, %c0_5] : memref<4x1x128xf32, #tpu.memory_space<vmem>>, vector<1x1x128xf32>
    %5 = vector.shape_cast %4 : vector<1x1x128xf32> to vector<1x128xf32>
    %c3 = arith.constant 3 : index
    %c0_6 = arith.constant 0 : index
    %c0_7 = arith.constant 0 : index
    %6 = vector.load %arg1[%c3, %c0_6, %c0_7] : memref<4x1x128xf32, #tpu.memory_space<vmem>>, vector<1x1x128xf32>
    %7 = vector.shape_cast %6 : vector<1x1x128xf32> to vector<1x128xf32>
    %c0_8 = arith.constant 0 : index
    %8 = memref.load %arg2[%c0_8] : memref<12xf32, #tpu.memory_space<smem>>
    %9 = vector.broadcast %8 : f32 to vector<1x128xf32>
    %10 = arith.mulf %1, %9 : vector<1x128xf32>
    %c3_9 = arith.constant 3 : index
    %11 = memref.load %arg2[%c3_9] : memref<12xf32, #tpu.memory_space<smem>>
    %12 = vector.broadcast %11 : f32 to vector<1x128xf32>
    %13 = arith.mulf %3, %12 : vector<1x128xf32>
    %14 = arith.addf %10, %13 : vector<1x128xf32>
    %c6 = arith.constant 6 : index
    %15 = memref.load %arg2[%c6] : memref<12xf32, #tpu.memory_space<smem>>
    %16 = vector.broadcast %15 : f32 to vector<1x128xf32>
    %17 = arith.mulf %5, %16 : vector<1x128xf32>
    %18 = arith.addf %14, %17 : vector<1x128xf32>
    %c9 = arith.constant 9 : index
    %19 = memref.load %arg2[%c9] : memref<12xf32, #tpu.memory_space<smem>>
    %20 = vector.broadcast %19 : f32 to vector<1x128xf32>
    %21 = arith.mulf %7, %20 : vector<1x128xf32>
    %22 = arith.addf %18, %21 : vector<1x128xf32>
    %c0_10 = arith.constant 0 : index
    %23 = memref.load %arg3[%c0_10] : memref<7xf32, #tpu.memory_space<smem>>
    %24 = vector.broadcast %23 : f32 to vector<1x128xf32>
    %25 = arith.addf %22, %24 : vector<1x128xf32>
    %cst = arith.constant 5.000000e-01 : f32
    %26 = vector.broadcast %cst : f32 to vector<1x128xf32>
    %27 = arith.mulf %26, %25 : vector<1x128xf32>
    %28 = math.tanh %27 : vector<1x128xf32>
    %cst_11 = arith.constant 5.000000e-01 : f32
    %29 = vector.broadcast %cst_11 : f32 to vector<1x128xf32>
    %30 = arith.mulf %29, %28 : vector<1x128xf32>
    %cst_12 = arith.constant 5.000000e-01 : f32
    %31 = vector.broadcast %cst_12 : f32 to vector<1x128xf32>
    %32 = arith.addf %30, %31 : vector<1x128xf32>
    %c3_13 = arith.constant 3 : index
    %33 = memref.load %arg3[%c3_13] : memref<7xf32, #tpu.memory_space<smem>>
    %34 = vector.broadcast %33 : f32 to vector<1x128xf32>
    %35 = arith.mulf %32, %34 : vector<1x128xf32>
    %c1_14 = arith.constant 1 : index
    %36 = memref.load %arg2[%c1_14] : memref<12xf32, #tpu.memory_space<smem>>
    %37 = vector.broadcast %36 : f32 to vector<1x128xf32>
    %38 = arith.mulf %1, %37 : vector<1x128xf32>
    %c4 = arith.constant 4 : index
    %39 = memref.load %arg2[%c4] : memref<12xf32, #tpu.memory_space<smem>>
    %40 = vector.broadcast %39 : f32 to vector<1x128xf32>
    %41 = arith.mulf %3, %40 : vector<1x128xf32>
    %42 = arith.addf %38, %41 : vector<1x128xf32>
    %c7 = arith.constant 7 : index
    %43 = memref.load %arg2[%c7] : memref<12xf32, #tpu.memory_space<smem>>
    %44 = vector.broadcast %43 : f32 to vector<1x128xf32>
    %45 = arith.mulf %5, %44 : vector<1x128xf32>
    %46 = arith.addf %42, %45 : vector<1x128xf32>
    %c10 = arith.constant 10 : index
    %47 = memref.load %arg2[%c10] : memref<12xf32, #tpu.memory_space<smem>>
    %48 = vector.broadcast %47 : f32 to vector<1x128xf32>
    %49 = arith.mulf %7, %48 : vector<1x128xf32>
    %50 = arith.addf %46, %49 : vector<1x128xf32>
    %c1_15 = arith.constant 1 : index
    %51 = memref.load %arg3[%c1_15] : memref<7xf32, #tpu.memory_space<smem>>
    %52 = vector.broadcast %51 : f32 to vector<1x128xf32>
    %53 = arith.addf %50, %52 : vector<1x128xf32>
    %cst_16 = arith.constant 5.000000e-01 : f32
    %54 = vector.broadcast %cst_16 : f32 to vector<1x128xf32>
    %55 = arith.mulf %54, %53 : vector<1x128xf32>
    %56 = math.tanh %55 : vector<1x128xf32>
    %cst_17 = arith.constant 5.000000e-01 : f32
    %57 = vector.broadcast %cst_17 : f32 to vector<1x128xf32>
    %58 = arith.mulf %57, %56 : vector<1x128xf32>
    %cst_18 = arith.constant 5.000000e-01 : f32
    %59 = vector.broadcast %cst_18 : f32 to vector<1x128xf32>
    %60 = arith.addf %58, %59 : vector<1x128xf32>
    %c4_19 = arith.constant 4 : index
    %61 = memref.load %arg3[%c4_19] : memref<7xf32, #tpu.memory_space<smem>>
    %62 = vector.broadcast %61 : f32 to vector<1x128xf32>
    %63 = arith.mulf %60, %62 : vector<1x128xf32>
    %64 = arith.addf %35, %63 : vector<1x128xf32>
    %c2_20 = arith.constant 2 : index
    %65 = memref.load %arg2[%c2_20] : memref<12xf32, #tpu.memory_space<smem>>
    %66 = vector.broadcast %65 : f32 to vector<1x128xf32>
    %67 = arith.mulf %1, %66 : vector<1x128xf32>
    %c5 = arith.constant 5 : index
    %68 = memref.load %arg2[%c5] : memref<12xf32, #tpu.memory_space<smem>>
    %69 = vector.broadcast %68 : f32 to vector<1x128xf32>
    %70 = arith.mulf %3, %69 : vector<1x128xf32>
    %71 = arith.addf %67, %70 : vector<1x128xf32>
    %c8 = arith.constant 8 : index
    %72 = memref.load %arg2[%c8] : memref<12xf32, #tpu.memory_space<smem>>
    %73 = vector.broadcast %72 : f32 to vector<1x128xf32>
    %74 = arith.mulf %5, %73 : vector<1x128xf32>
    %75 = arith.addf %71, %74 : vector<1x128xf32>
    %c11 = arith.constant 11 : index
    %76 = memref.load %arg2[%c11] : memref<12xf32, #tpu.memory_space<smem>>
    %77 = vector.broadcast %76 : f32 to vector<1x128xf32>
    %78 = arith.mulf %7, %77 : vector<1x128xf32>
    %79 = arith.addf %75, %78 : vector<1x128xf32>
    %c2_21 = arith.constant 2 : index
    %80 = memref.load %arg3[%c2_21] : memref<7xf32, #tpu.memory_space<smem>>
    %81 = vector.broadcast %80 : f32 to vector<1x128xf32>
    %82 = arith.addf %79, %81 : vector<1x128xf32>
    %cst_22 = arith.constant 5.000000e-01 : f32
    %83 = vector.broadcast %cst_22 : f32 to vector<1x128xf32>
    %84 = arith.mulf %83, %82 : vector<1x128xf32>
    %85 = math.tanh %84 : vector<1x128xf32>
    %cst_23 = arith.constant 5.000000e-01 : f32
    %86 = vector.broadcast %cst_23 : f32 to vector<1x128xf32>
    %87 = arith.mulf %86, %85 : vector<1x128xf32>
    %cst_24 = arith.constant 5.000000e-01 : f32
    %88 = vector.broadcast %cst_24 : f32 to vector<1x128xf32>
    %89 = arith.addf %87, %88 : vector<1x128xf32>
    %c5_25 = arith.constant 5 : index
    %90 = memref.load %arg3[%c5_25] : memref<7xf32, #tpu.memory_space<smem>>
    %91 = vector.broadcast %90 : f32 to vector<1x128xf32>
    %92 = arith.mulf %89, %91 : vector<1x128xf32>
    %93 = arith.addf %64, %92 : vector<1x128xf32>
    %c6_26 = arith.constant 6 : index
    %94 = memref.load %arg3[%c6_26] : memref<7xf32, #tpu.memory_space<smem>>
    %95 = vector.broadcast %94 : f32 to vector<1x128xf32>
    %96 = arith.addf %93, %95 : vector<1x128xf32>
    %cst_27 = arith.constant 5.000000e-01 : f32
    %97 = vector.broadcast %cst_27 : f32 to vector<1x128xf32>
    %98 = arith.mulf %97, %96 : vector<1x128xf32>
    %99 = math.tanh %98 : vector<1x128xf32>
    %cst_28 = arith.constant 5.000000e-01 : f32
    %100 = vector.broadcast %cst_28 : f32 to vector<1x128xf32>
    %101 = arith.mulf %100, %99 : vector<1x128xf32>
    %cst_29 = arith.constant 5.000000e-01 : f32
    %102 = vector.broadcast %cst_29 : f32 to vector<1x128xf32>
    %103 = arith.addf %101, %102 : vector<1x128xf32>
    %c0_30 = arith.constant 0 : index
    %c0_31 = arith.constant 0 : index
    %104 = vector.load %arg4[%c0_30, %c0_31] : memref<1x128xf32, #tpu.memory_space<vmem>>, vector<1x128xf32>
    tpu.vector_store %arg4[%c0_30, %c0_31], %103 {strides = array<i32>} : memref<1x128xf32, #tpu.memory_space<vmem>>, vector<1x128xf32>,
    return
  }
  func.func @transform_0(%arg0: i32) -> (i32, i32, i32) {
    %c0_i32 = arith.constant 0 : i32
    %c0_i32_0 = arith.constant 0 : i32
    %c0_i32_1 = arith.constant 0 : i32
    return %c0_i32, %arg0, %c0_i32_0 : i32, i32, i32
  }
  func.func @transform_1(%arg0: i32) -> i32 {
    %c0_i32 = arith.constant 0 : i32
    %c0_i32_0 = arith.constant 0 : i32
    return %c0_i32 : i32
  }
  func.func @transform_2(%arg0: i32) -> i32 {
    %c0_i32 = arith.constant 0 : i32
    %c0_i32_0 = arith.constant 0 : i32
    return %c0_i32 : i32
  }
  func.func @transform_3(%arg0: i32) -> (i32, i32) {
    %c0_i32 = arith.constant 0 : i32
    %c0_i32_0 = arith.constant 0 : i32
    return %arg0, %c0_i32 : i32, i32
  }
}

</mosaic_0001>

<llo_original>
// kernel: tpu_custom_call.1
$region0: #{tpu_custom_call.1}
  #allocation0 [shape = 'u32[]', space=smem, size = 0x4, offset = 0x4, fixed_abs, tag = 'smem constant byte address 0x4 - core index']
  #allocation1 [shape = 'u32[144,128]{1,0:T(1,128)}', space=vmem, size = 0x12000, scoped, tag = 'internal scratch']
  %s0 = inlined_call_operand.hbm [shape: f32[4,1,128], index: 0, kind: input, shape index: {}]
  %s1 = inlined_call_operand.vmem [shape: f32[12], index: 1, kind: input, shape index: {}]
  %s2 = inlined_call_operand.vmem [shape: f32[7], index: 2, kind: input, shape index: {}]
  %s3 = inlined_call_operand.hbm [shape: f32[1,128], index: 3, kind: output, shape index: {}]
  %s4 = sld [smem:[#allocation0]]
  $region34: #{tpu_custom_call.1} parent=0
    _
  %s6 = ssub.s32 1, %s4
  %s7 = scalar_select 0, %s6, %s4
  $region1: #{tpu_custom_call.1} parent=0
    #allocation2 [shape = 'u8[2048]{0}', space=vmem, size = 0x800, scoped, tag = 'input window, operand 0, single buffered']
    #allocation3 [shape = 's32[1]{0}', space=sflag, size = 0x4, scoped, tag = 'scoped memory for tpu_custom_call.1']
    #allocation4 [shape = 's32[1]{0}', space=sflag, size = 0x4, scoped, tag = 'scoped memory for tpu_custom_call.1']
    #allocation5 [shape = 's32[1]{0}', space=sflag, size = 0x4, scoped, tag = 'scoped memory for tpu_custom_call.1']
    #allocation6 [shape = 'u8[512]{0}', space=smem, size = 0x200, scoped, tag = 'input window, operand 1, single buffered']
    #allocation7 [shape = 'u8[512]{0}', space=smem, size = 0x200, scoped, tag = 'input window, operand 2, single buffered']
    #allocation8 [shape = 's32[1]{0}', space=sflag, size = 0x4, scoped, tag = 'scoped memory for tpu_custom_call.1']
    #allocation9 [shape = 'u8[512]{0}', space=vmem, size = 0x400, scoped, tag = 'output window, operand 0, single buffered']
    %8 = vsyncpa [#allocation3], 0
    %9 = vsyncpa [#allocation5], 0
    %10 = vsyncpa [#allocation8], 0
    %11 = vsyncpa [#allocation4], 0
    // Predicated region
    $region2: #{tpu_custom_call.1} parent=1 // pred_check
      _
    $region3: #{tpu_custom_call.1} parent=1 // pred_check_branch
      %13 = sbr.rel (0) target = $region5
    $region4: #{tpu_custom_call.1} parent=1 // pred_region
      %s15 = ssub.s32 64, 64
      %16 = vsyncadd [#allocation3], %s15
      %s17 = sshll.u32 [#allocation2], 4
      %s18 = int_to_ptr.vmem [resolvable:$true] %s17
      %23 = dma.hbm_to_vmem [thread:$0]  %s0, 64, %s18, [#allocation3], 16, 16, 1
    $region5: #{tpu_custom_call.1} parent=1 // pred_fallthru
      _
    // Predicated region
    $region6: #{tpu_custom_call.1} parent=1 // pred_check
      _
    $region7: #{tpu_custom_call.1} parent=1 // pred_check_branch
      %25 = sbr.rel (0) target = $region9
    $region8: #{tpu_custom_call.1} parent=1 // pred_region
      %s27 = ssub.s32 16, 16
      %28 = vsyncadd [#allocation5], %s27
      %s30 = sshll.u32 %s1, 4
      %s31 = int_to_ptr.vmem [resolvable:$true] %s30
      %33 = dma.vmem_to_smem %s31, 16, [#allocation6], [#allocation5]
    $region9: #{tpu_custom_call.1} parent=1 // pred_fallthru
      _
    // Predicated region
    $region10: #{tpu_custom_call.1} parent=1 // pred_check
      _
    $region11: #{tpu_custom_call.1} parent=1 // pred_check_branch
      %35 = sbr.rel (0) target = $region13
    $region12: #{tpu_custom_call.1} parent=1 // pred_region
      %s37 = ssub.s32 16, 16
      %38 = vsyncadd [#allocation8], %s37
      %s40 = sshll.u32 %s2, 4
      %s41 = int_to_ptr.vmem [resolvable:$true] %s40
      %43 = dma.vmem_to_smem %s41, 16, [#allocation7], [#allocation8]
    $region13: #{tpu_custom_call.1} parent=1 // pred_fallthru
      _
    // Predicated region
    $region14: #{tpu_custom_call.1} parent=1 // pred_check
      _
    $region15: #{tpu_custom_call.1} parent=1 // pred_check_branch
      %45 = sbr.rel (0) target = $region17
    $region16: #{tpu_custom_call.1} parent=1 // pred_region
      %46 = dma.done [#allocation3], 64
    $region17: #{tpu_custom_call.1} parent=1 // pred_fallthru
      _
    // Predicated region
    $region18: #{tpu_custom_call.1} parent=1 // pred_check
      _
    $region19: #{tpu_custom_call.1} parent=1 // pred_check_branch
      %48 = sbr.rel (0) target = $region21
    $region20: #{tpu_custom_call.1} parent=1 // pred_region
      %49 = dma.done [#allocation5], 16
    $region21: #{tpu_custom_call.1} parent=1 // pred_fallthru
      _
    // Predicated region
    $region22: #{tpu_custom_call.1} parent=1 // pred_check
      _
    $region23: #{tpu_custom_call.1} parent=1 // pred_check_branch
      %51 = sbr.rel (0) target = $region25
    $region24: #{tpu_custom_call.1} parent=1 // pred_region
      %52 = dma.done [#allocation8], 16
    $region25: #{tpu_custom_call.1} parent=1 // pred_fallthru
      _
    %53 = sfence
    %v54 = vld [vmem:[#allocation2] sm:$0x1]
    %s55 = scalar_lea.vmem [#allocation2], 1
    %v56 = vld [vmem:[%s55] sm:$0x1]
    %s57 = scalar_lea.vmem [#allocation2], 2
    %v58 = vld [vmem:[%s57] sm:$0x1]
    %s59 = scalar_lea.vmem [#allocation2], 3
    %v60 = vld [vmem:[%s59] sm:$0x1]
    %s61 = sld [smem:[#allocation6]]
    %v62 = vstv %s61
    %v63 = vmul.f32 %v54, %v62
    %s64 = sld [smem:[#allocation6 + $0x3]]
    %v65 = vstv %s64
    %v66 = vmul.f32 %v56, %v65
    %v67 = vadd.f32 %v63, %v66
    %s68 = sld [smem:[#allocation6 + $0x6]]
    %v69 = vstv %s68
    %v70 = vmul.f32 %v58, %v69
    %v71 = vadd.f32 %v67, %v70
    %s72 = sld [smem:[#allocation6 + $0x9]]
    %v73 = vstv %s72
    %v74 = vmul.f32 %v60, %v73
    %v75 = vadd.f32 %v71, %v74
    %s76 = sld [smem:[#allocation7]]
    %v77 = vstv %s76
    %v78 = vadd.f32 %v75, %v77
    %v79 = vmul.f32 %v78, 0.5
    %v80 = vtanh.pop %v79
    %v81 = vmul.f32 %v80, 0.5
    %v82 = vadd.f32 %v81, 0.5
    %s83 = sld [smem:[#allocation7 + $0x3]]
    %v84 = vstv %s83
    %v85 = vmul.f32 %v82, %v84
    %s86 = sld [smem:[#allocation6 + $0x1]]
    %v87 = vstv %s86
    %v88 = vmul.f32 %v54, %v87
    %s89 = sld [smem:[#allocation6 + $0x4]]
    %v90 = vstv %s89
    %v91 = vmul.f32 %v56, %v90
    %v92 = vadd.f32 %v88, %v91
    %s93 = sld [smem:[#allocation6 + $0x7]]
    %v94 = vstv %s93
    %v95 = vmul.f32 %v58, %v94
    %v96 = vadd.f32 %v92, %v95
    %s97 = sld [smem:[#allocation6 + $0xa]]
    %v98 = vstv %s97
    %v99 = vmul.f32 %v60, %v98
    %v100 = vadd.f32 %v96, %v99
    %s101 = sld [smem:[#allocation7 + $0x1]]
    %v102 = vstv %s101
    %v103 = vadd.f32 %v100, %v102
    %v104 = vmul.f32 %v103, 0.5
    %v105 = vtanh.pop %v104
    %v106 = vmul.f32 %v105, 0.5
    %v107 = vadd.f32 %v106, 0.5
    %s108 = sld [smem:[#allocation7 + $0x4]]
    %v109 = vstv %s108
    %v110 = vmul.f32 %v107, %v109
    %v111 = vadd.f32 %v85, %v110
    %s112 = sld [smem:[#allocation6 + $0x2]]
    %v113 = vstv %s112
    %v114 = vmul.f32 %v54, %v113
    %s115 = sld [smem:[#allocation6 + $0x5]]
    %v116 = vstv %s115
    %v117 = vmul.f32 %v56, %v116
    %v118 = vadd.f32 %v114, %v117
    %s119 = sld [smem:[#allocation6 + $0x8]]
    %v120 = vstv %s119
    %v121 = vmul.f32 %v58, %v120
    %v122 = vadd.f32 %v118, %v121
    %s123 = sld [smem:[#allocation6 + $0xb]]
    %v124 = vstv %s123
    %v125 = vmul.f32 %v60, %v124
    %v126 = vadd.f32 %v122, %v125
    %s127 = sld [smem:[#allocation7 + $0x2]]
    %v128 = vstv %s127
    %v129 = vadd.f32 %v126, %v128
    %v130 = vmul.f32 %v129, 0.5
    %v131 = vtanh.pop %v130
    %v132 = vmul.f32 %v131, 0.5
    %v133 = vadd.f32 %v132, 0.5
    %s134 = sld [smem:[#allocation7 + $0x5]]
    %v135 = vstv %s134
    %v136 = vmul.f32 %v133, %v135
    %v137 = vadd.f32 %v111, %v136
    %s138 = sld [smem:[#allocation7 + $0x6]]
    %v139 = vstv %s138
    %v140 = vadd.f32 %v137, %v139
    %v141 = vmul.f32 %v140, 0.5
    %v142 = vtanh.pop %v141
    %v143 = vmul.f32 %v142, 0.5
    %v144 = vadd.f32 %v143, 0.5
    %145 = vst [vmem:[#allocation9] sm:$0x1] %v144
    // Predicated region
    $region26: #{tpu_custom_call.1} parent=1 // pred_check
      _
    $region27: #{tpu_custom_call.1} parent=1 // pred_check_branch
      %147 = sbr.rel (0) target = $region29
    $region28: #{tpu_custom_call.1} parent=1 // pred_region
      %s149 = ssub.s32 16, 16
      %150 = vsyncadd [#allocation4], %s149
      %s152 = sshll.u32 [#allocation9], 4
      %s153 = int_to_ptr.vmem [resolvable:$true] %s152
      %155 = dma.vmem_to_hbm [thread:$0]  %s153, 16, %s3, [#allocation4]
    $region29: #{tpu_custom_call.1} parent=1 // pred_fallthru
      _
    // Predicated region
    $region30: #{tpu_custom_call.1} parent=1 // pred_check
      _
    $region31: #{tpu_custom_call.1} parent=1 // pred_check_branch
      %157 = sbr.rel (0) target = $region33
    $region32: #{tpu_custom_call.1} parent=1 // pred_region
      %158 = dma.done [#allocation4], 16
    $region33: #{tpu_custom_call.1} parent=1 // pred_fallthru
      _
    %159 = vsyncpa [#allocation3], 1
    %160 = vsyncpa [#allocation4], 1
    %161 = vsyncpa [#allocation5], 1
    %162 = vsyncpa [#allocation8], 1

</llo_original>
